<compile_context>
chip_gen: v6e
topology: v6e:2x2x1
jax: 0.10.0
libtpu: 0.0.40
codegen_flags: <defaults>
</compile_context>

<pallas_src>
import jax
import jax.numpy as jnp
from jax.experimental import pallas as pl
from jax.experimental.pallas import tpu as pltpu

IN_FEATURES = 30
OUT_FEATURES = 2
FOLD = 64  # rows folded into lanes: 30*64 = 1920 in-lanes, 2*64 = 128 out-lanes


def _folded_linear_kernel(x_ref, w_ref, b_ref, o_ref):
    # x_ref: (tb, FOLD*30), w_ref: (FOLD*30, FOLD*2), b_ref: (1, FOLD*2)
    y = jnp.dot(x_ref[...], w_ref[...], preferred_element_type=jnp.float32)
    o_ref[...] = (y + b_ref[...]).astype(o_ref.dtype)


def _round_up(n, m):
    return ((n + m - 1) // m) * m


def svm_forward(x, weight, bias, *, block_rows=512,
                vmem_limit_bytes=32 * 1024 * 1024):
    """y = x @ weight.T + bias  (PyTorch nn.Linear(30, 2) semantics).

    x:      (B, 30)
    weight: (2, 30)   PyTorch layout (out_features, in_features)
    bias:   (2,)
    returns (B, 2); output dtype explicitly follows x.dtype.

    block_rows: batch tile in *folded* rows (1 folded row = 64 input rows).
      Default 512 => 32768 input rows (~4 MB of x) per grid step.  For very
      large batches keep it small enough that the grid has >= 4-8 steps so the
      "parallel" axis can shard across TensorCores (v7x).
    """
    B = x.shape[0]
    assert x.shape[1] == IN_FEATURES
    out_dtype = x.dtype

    # ---- fold 64 rows into the lane dim (zero-copy when B % 64 == 0) -------
    bp = _round_up(B, FOLD)
    if bp != B:
        # Bounded (< 64-row) pad only to make the fold reshape legal; padded
        # rows produce bias-only outputs that are sliced off below.
        # TODO(synk): a strictly copy-free ragged path would need a second,
        # unfolded kernel for the < 64-row remainder.
        x = jnp.pad(x, ((0, bp - B), (0, 0)))
    rows = bp // FOLD
    xf = x.reshape(rows, FOLD * IN_FEATURES)                       # (rows, 1920)

    # Block-diagonal weight and tiled bias (tiny; callers can precompute).
    w_bd = jnp.kron(jnp.eye(FOLD, dtype=weight.dtype), weight.T)   # (1920, 128)
    b_tl = jnp.tile(bias, FOLD).reshape(1, FOLD * OUT_FEATURES)    # (1, 128)

    # ---- batch tile: multiple of 8 folded rows, never larger than `rows` ---
    tb = min(block_rows, rows)
    tb = (tb // 8) * 8
    if tb == 0:
        tb = rows              # rows < 8: one block equal to the full extent
    grid = (pl.cdiv(rows, tb),)  # last block may be partial -> no pad to tb

    yf = pl.pallas_call(
        _folded_linear_kernel,
        out_shape=jax.ShapeDtypeStruct((rows, FOLD * OUT_FEATURES), out_dtype),
        grid_spec=pltpu.PrefetchScalarGridSpec(
            num_scalar_prefetch=0,
            grid=grid,
            in_specs=[
                # x: stream lane-dense folded batch tiles.
                pl.BlockSpec((tb, FOLD * IN_FEATURES), lambda i: (i, 0)),
                # weight / bias: constant index_map -> resident in VMEM.
                pl.BlockSpec((FOLD * IN_FEATURES, FOLD * OUT_FEATURES),
                             lambda i: (0, 0)),
                pl.BlockSpec((1, FOLD * OUT_FEATURES), lambda i: (0, 0)),
            ],
            out_specs=pl.BlockSpec((tb, FOLD * OUT_FEATURES), lambda i: (i, 0)),
        ),
        compiler_params=pltpu.CompilerParams(
            dimension_semantics=("parallel",),
            vmem_limit_bytes=vmem_limit_bytes,
        ),
    )(xf, w_bd, b_tl)

    y = yf.reshape(bp, OUT_FEATURES)   # free, contiguous reshape back to (B, 2)
    if bp != B:
        y = y[:B]
    return y


if __name__ == "__main__":
    key = jax.random.PRNGKey(0)
    kx, kw, kb = jax.random.split(key, 3)

    # Deterministic parameters mimicking PyTorch nn.Linear default init range.
    bound = 1.0 / jnp.sqrt(jnp.float32(IN_FEATURES))
    weight = jax.random.uniform(
        kw, (OUT_FEATURES, IN_FEATURES), dtype=jnp.float32,
        minval=-bound, maxval=bound)
    bias = jax.random.uniform(
        kb, (OUT_FEATURES,), dtype=jnp.float32, minval=-bound, maxval=bound)

    # Case 1: fold-aligned batch (B % 64 == 0) -> zero-copy path, single tile.
    b1 = 512
    x1 = jax.random.normal(kx, (b1, IN_FEATURES), dtype=jnp.float32)
    y1 = svm_forward(x1, weight, bias)
    jax.block_until_ready(y1)
    ref1 = x1 @ weight.T + bias
    assert y1.shape == (b1, OUT_FEATURES)
    assert bool(jnp.allclose(y1, ref1, atol=1e-4, rtol=1e-4)), \
        float(jnp.max(jnp.abs(y1 - ref1)))

    # Case 2: ragged batch + small tile -> bounded (<64-row) pad, 3-step grid
    # with a partial last block, output sliced back to B rows.
    b2 = 1324
    x2 = jax.random.normal(jax.random.PRNGKey(1), (b2, IN_FEATURES),
                           dtype=jnp.float32)
    y2 = svm_forward(x2, weight, bias, block_rows=8)
    jax.block_until_ready(y2)
    ref2 = x2 @ weight.T + bias
    assert y2.shape == (b2, OUT_FEATURES)
    assert bool(jnp.allclose(y2, ref2, atol=1e-4, rtol=1e-4)), \
        float(jnp.max(jnp.abs(y2 - ref2)))

    print("KERNEL_OK")
</pallas_src>

<mosaic_0001>
module attributes {stable_mosaic.version = 11 : i64} {
  func.func @_folded_linear_kernel(%arg0: i32, %arg1: memref<8x1920xf32, #tpu.memory_space<vmem>>, %arg2: memref<1920x128xf32, #tpu.memory_space<vmem>>, %arg3: memref<1x128xf32, #tpu.memory_space<vmem>>, %arg4: memref<8x128xf32, #tpu.memory_space<vmem>>) attributes {dimension_semantics = [#tpu.dimension_semantics<parallel>], iteration_bounds = array<i64: 1>, scalar_prefetch = 0 : i64, scratch_operands = 0 : i64, tpu.core_type = #tpu.core_type<tc>, window_params = [{transform_indices = @transform_0, window_bounds = array<i64: 8, 1920>}, {pipeline_mode = #tpu.pipeline_mode<synchronous>, transform_indices = @transform_1, window_bounds = array<i64: 1920, 128>}, {pipeline_mode = #tpu.pipeline_mode<synchronous>, transform_indices = @transform_2, window_bounds = array<i64: 1, 128>}, {transform_indices = @transform_3, window_bounds = array<i64: 8, 128>}]} {
    %c0 = arith.constant 0 : index
    %c0_0 = arith.constant 0 : index
    %0 = vector.load %arg1[%c0, %c0_0] : memref<8x1920xf32, #tpu.memory_space<vmem>>, vector<8x1920xf32>
    %c0_1 = arith.constant 0 : index
    %c0_2 = arith.constant 0 : index
    %1 = vector.load %arg2[%c0_1, %c0_2] : memref<1920x128xf32, #tpu.memory_space<vmem>>, vector<1920x128xf32>
    %cst = arith.constant dense<0.000000e+00> : vector<8x128xf32>
    %2 = tpu.matmul %0, %1, %cst {dimension_numbers = #tpu.dot_dimension_numbers<[1], [0], [0], [1], [0, 0, 1, 1], [], []>} : vector<8x1920xf32>, vector<1920x128xf32>, vector<8x128xf32> -> vector<8x128xf32>
    %c0_3 = arith.constant 0 : index
    %c0_4 = arith.constant 0 : index
    %3 = vector.load %arg3[%c0_3, %c0_4] : memref<1x128xf32, #tpu.memory_space<vmem>>, vector<1x128xf32>
    %4 = vector.broadcast %3 : vector<1x128xf32> to vector<8x128xf32>
    %5 = arith.addf %2, %4 : vector<8x128xf32>
    %c0_5 = arith.constant 0 : index
    %c0_6 = arith.constant 0 : index
    %6 = vector.load %arg4[%c0_5, %c0_6] : memref<8x128xf32, #tpu.memory_space<vmem>>, vector<8x128xf32>
    tpu.vector_store %arg4[%c0_5, %c0_6], %5 {strides = array<i32>} : memref<8x128xf32, #tpu.memory_space<vmem>>, vector<8x128xf32>,
    return
  }
  func.func @transform_0(%arg0: i32) -> (i32, i32) {
    %c0_i32 = arith.constant 0 : i32
    %c0_i32_0 = arith.constant 0 : i32
    return %arg0, %c0_i32 : i32, i32
  }
  func.func @transform_1(%arg0: i32) -> (i32, i32) {
    %c0_i32 = arith.constant 0 : i32
    %c0_i32_0 = arith.constant 0 : i32
    %c0_i32_1 = arith.constant 0 : i32
    return %c0_i32, %c0_i32_0 : i32, i32
  }
  func.func @transform_2(%arg0: i32) -> (i32, i32) {
    %c0_i32 = arith.constant 0 : i32
    %c0_i32_0 = arith.constant 0 : i32
    %c0_i32_1 = arith.constant 0 : i32
    return %c0_i32, %c0_i32_0 : i32, i32
  }
  func.func @transform_3(%arg0: i32) -> (i32, i32) {
    %c0_i32 = arith.constant 0 : i32
    %c0_i32_0 = arith.constant 0 : i32
    return %arg0, %c0_i32 : i32, i32
  }
}

</mosaic_0001>

<llo_original>
// kernel: tpu_custom_call.1
$region0: #{tpu_custom_call.1}
  #allocation0 [shape = 'u32[]', space=smem, size = 0x4, offset = 0x4, fixed_abs, tag = 'smem constant byte address 0x4 - core index']
  #allocation1 [shape = 'u32[144,128]{1,0:T(1,128)}', space=vmem, size = 0x12000, scoped, tag = 'internal scratch']
  %s0 = inlined_call_operand.hbm [shape: f32[8,1920], index: 0, kind: input, shape index: {}]
  %s1 = inlined_call_operand.hbm [shape: f32[1920,128], index: 1, kind: input, shape index: {}]
  %s2 = inlined_call_operand.vmem [shape: f32[1,128], index: 2, kind: input, shape index: {}]
  %s3 = inlined_call_operand.hbm [shape: f32[8,128], index: 3, kind: output, shape index: {}]
  %s4 = sld [smem:[#allocation0]]
  $region30: #{tpu_custom_call.1} parent=0
    _
  %s6 = ssub.s32 1, %s4
  %s7 = scalar_select 0, %s6, %s4
  $region1: #{tpu_custom_call.1} parent=0
    #allocation2 [shape = 'u8[61440]{0}', space=vmem, size = 0xf000, scoped, tag = 'input window, operand 0, single buffered']
    #allocation3 [shape = 's32[1]{0}', space=sflag, size = 0x4, scoped, tag = 'scoped memory for tpu_custom_call.1']
    #allocation4 [shape = 's32[1]{0}', space=sflag, size = 0x4, scoped, tag = 'scoped memory for tpu_custom_call.1']
    #allocation5 [shape = 'u8[983040]{0}', space=vmem, size = 0xf0000, scoped, tag = 'input window, operand 1, single buffered']
    #allocation6 [shape = 's32[1]{0}', space=sflag, size = 0x4, scoped, tag = 'scoped memory for tpu_custom_call.1']
    #allocation7 [shape = 'u8[4096]{0}', space=vmem, size = 0x1000, scoped, tag = 'output window, operand 0, single buffered']
    %8 = vsyncpa [#allocation3], 0
    %9 = vsyncpa [#allocation6], 0
    %10 = vsyncpa [#allocation4], 0
    // Predicated region
    $region2: #{tpu_custom_call.1} parent=1 // pred_check
      _
    $region3: #{tpu_custom_call.1} parent=1 // pred_check_branch
      %12 = sbr.rel (0) target = $region5
    $region4: #{tpu_custom_call.1} parent=1 // pred_region
      %s14 = ssub.s32 1920, 1920
      %15 = vsyncadd [#allocation3], %s14
      %s17 = sshll.u32 [#allocation2], 4
      %s18 = int_to_ptr.vmem [resolvable:$true] %s17
      %20 = dma.hbm_to_vmem [thread:$0]  %s0, 1920, %s18, [#allocation3]
    $region5: #{tpu_custom_call.1} parent=1 // pred_fallthru
      _
    // Predicated region
    $region6: #{tpu_custom_call.1} parent=1 // pred_check
      _
    $region7: #{tpu_custom_call.1} parent=1 // pred_check_branch
      %22 = sbr.rel (0) target = $region9
    $region8: #{tpu_custom_call.1} parent=1 // pred_region
      %s24 = ssub.s32 30720, 30720
      %25 = vsyncadd [#allocation6], %s24
      %s26 = sshll.u32 [#allocation5], 4
      %s27 = int_to_ptr.vmem [resolvable:$true] %s26
      %32 = dma.hbm_to_vmem [thread:$0]  %s1, 30720, %s27, [#allocation6], 128, 128, 8
    $region9: #{tpu_custom_call.1} parent=1 // pred_fallthru
      _
    // Predicated region
    $region10: #{tpu_custom_call.1} parent=1 // pred_check
      _
    $region11: #{tpu_custom_call.1} parent=1 // pred_check_branch
      %34 = sbr.rel (0) target = $region13
    $region12: #{tpu_custom_call.1} parent=1 // pred_region
      _
    $region13: #{tpu_custom_call.1} parent=1 // pred_fallthru
      _
    // Predicated region
    $region14: #{tpu_custom_call.1} parent=1 // pred_check
      _
    $region15: #{tpu_custom_call.1} parent=1 // pred_check_branch
      %36 = sbr.rel (0) target = $region17
    $region16: #{tpu_custom_call.1} parent=1 // pred_region
      %37 = dma.done [#allocation3], 1920
    $region17: #{tpu_custom_call.1} parent=1 // pred_fallthru
      _
    // Predicated region
    $region18: #{tpu_custom_call.1} parent=1 // pred_check
      _
    $region19: #{tpu_custom_call.1} parent=1 // pred_check_branch
      %39 = sbr.rel (0) target = $region21
    $region20: #{tpu_custom_call.1} parent=1 // pred_region
      %40 = dma.done [#allocation6], 30720
    $region21: #{tpu_custom_call.1} parent=1 // pred_fallthru
      _
    %v41 = vld [vmem:[#allocation2] sm:$0xff]
    %v42 = vld [vmem:[#allocation2 + $0x8] sm:$0xff]
    %v43 = vld [vmem:[#allocation2 + $0x10] sm:$0xff]
    %v44 = vld [vmem:[#allocation2 + $0x18] sm:$0xff]
    %v45 = vld [vmem:[#allocation2 + $0x20] sm:$0xff]
    %v46 = vld [vmem:[#allocation2 + $0x28] sm:$0xff]
    %v47 = vld [vmem:[#allocation2 + $0x30] sm:$0xff]
    %v48 = vld [vmem:[#allocation2 + $0x38] sm:$0xff]
    %v49 = vld [vmem:[#allocation2 + $0x40] sm:$0xff]
    %v50 = vld [vmem:[#allocation2 + $0x48] sm:$0xff]
    %v51 = vld [vmem:[#allocation2 + $0x50] sm:$0xff]
    %v52 = vld [vmem:[#allocation2 + $0x58] sm:$0xff]
    %v53 = vld [vmem:[#allocation2 + $0x60] sm:$0xff]
    %v54 = vld [vmem:[#allocation2 + $0x68] sm:$0xff]
    %v55 = vld [vmem:[#allocation2 + $0x70] sm:$0xff]
    %v56 = vld [vmem:[#allocation5] sm:$0xff]
    %v57 = vld [vmem:[#allocation5 + $0x8] sm:$0xff]
    %v58 = vld [vmem:[#allocation5 + $0x10] sm:$0xff]
    %v59 = vld [vmem:[#allocation5 + $0x18] sm:$0xff]
    %v60 = vld [vmem:[#allocation5 + $0x20] sm:$0xff]
    %v61 = vld [vmem:[#allocation5 + $0x28] sm:$0xff]
    %v62 = vld [vmem:[#allocation5 + $0x30] sm:$0xff]
    %v63 = vld [vmem:[#allocation5 + $0x38] sm:$0xff]
    %v64 = vld [vmem:[#allocation5 + $0x40] sm:$0xff]
    %v65 = vld [vmem:[#allocation5 + $0x48] sm:$0xff]
    %v66 = vld [vmem:[#allocation5 + $0x50] sm:$0xff]
    %v67 = vld [vmem:[#allocation5 + $0x58] sm:$0xff]
    %v68 = vld [vmem:[#allocation5 + $0x60] sm:$0xff]
    %v69 = vld [vmem:[#allocation5 + $0x68] sm:$0xff]
    %v70 = vld [vmem:[#allocation5 + $0x70] sm:$0xff]
    %v71 = vld [vmem:[#allocation5 + $0x78] sm:$0xff]
    %v72 = vld [vmem:[#allocation5 + $0x80] sm:$0xff]
    %v73 = vld [vmem:[#allocation5 + $0x88] sm:$0xff]
    %v74 = vld [vmem:[#allocation5 + $0x90] sm:$0xff]
    %v75 = vld [vmem:[#allocation5 + $0x98] sm:$0xff]
    %v76 = vld [vmem:[#allocation5 + $0xa0] sm:$0xff]
    %v77 = vld [vmem:[#allocation5 + $0xa8] sm:$0xff]
    %v78 = vld [vmem:[#allocation5 + $0xb0] sm:$0xff]
    %v79 = vld [vmem:[#allocation5 + $0xb8] sm:$0xff]
    %v80 = vld [vmem:[#allocation5 + $0xc0] sm:$0xff]
    %v81 = vld [vmem:[#allocation5 + $0xc8] sm:$0xff]
    %v82 = vld [vmem:[#allocation5 + $0xd0] sm:$0xff]
    %v83 = vld [vmem:[#allocation5 + $0xd8] sm:$0xff]
    %v84 = vld [vmem:[#allocation5 + $0xe0] sm:$0xff]
    %v85 = vld [vmem:[#allocation5 + $0xe8] sm:$0xff]
    %v86 = vld [vmem:[#allocation5 + $0xf0] sm:$0xff]
    %v87 = vld [vmem:[#allocation5 + $0xf8] sm:$0xff]
    %v88 = vld [vmem:[#allocation5 + $0x100] sm:$0xff]
    %v89 = vld [vmem:[#allocation5 + $0x108] sm:$0xff]
    %v90 = vld [vmem:[#allocation5 + $0x110] sm:$0xff]
    %v91 = vld [vmem:[#allocation5 + $0x118] sm:$0xff]
    %v92 = vld [vmem:[#allocation5 + $0x120] sm:$0xff]
    %v93 = vld [vmem:[#allocation5 + $0x128] sm:$0xff]
    %v94 = vld [vmem:[#allocation5 + $0x130] sm:$0xff]
    %v95 = vld [vmem:[#allocation5 + $0x138] sm:$0xff]
    %v96 = vld [vmem:[#allocation5 + $0x140] sm:$0xff]
    %v97 = vld [vmem:[#allocation5 + $0x148] sm:$0xff]
    %v98 = vld [vmem:[#allocation5 + $0x150] sm:$0xff]
    %v99 = vld [vmem:[#allocation5 + $0x158] sm:$0xff]
    %v100 = vld [vmem:[#allocation5 + $0x160] sm:$0xff]
    %v101 = vld [vmem:[#allocation5 + $0x168] sm:$0xff]
    %v102 = vld [vmem:[#allocation5 + $0x170] sm:$0xff]
    %v103 = vld [vmem:[#allocation5 + $0x178] sm:$0xff]
    %v104 = vld [vmem:[#allocation5 + $0x180] sm:$0xff]
    %v105 = vld [vmem:[#allocation5 + $0x188] sm:$0xff]
    %v106 = vld [vmem:[#allocation5 + $0x190] sm:$0xff]
    %v107 = vld [vmem:[#allocation5 + $0x198] sm:$0xff]
    %v108 = vld [vmem:[#allocation5 + $0x1a0] sm:$0xff]
    %v109 = vld [vmem:[#allocation5 + $0x1a8] sm:$0xff]
    %v110 = vld [vmem:[#allocation5 + $0x1b0] sm:$0xff]
    %v111 = vld [vmem:[#allocation5 + $0x1b8] sm:$0xff]
    %v112 = vld [vmem:[#allocation5 + $0x1c0] sm:$0xff]
    %v113 = vld [vmem:[#allocation5 + $0x1c8] sm:$0xff]
    %v114 = vld [vmem:[#allocation5 + $0x1d0] sm:$0xff]
    %v115 = vld [vmem:[#allocation5 + $0x1d8] sm:$0xff]
    %v116 = vld [vmem:[#allocation5 + $0x1e0] sm:$0xff]
    %v117 = vld [vmem:[#allocation5 + $0x1e8] sm:$0xff]
    %v118 = vld [vmem:[#allocation5 + $0x1f0] sm:$0xff]
    %v119 = vld [vmem:[#allocation5 + $0x1f8] sm:$0xff]
    %v120 = vld [vmem:[#allocation5 + $0x200] sm:$0xff]
    %v121 = vld [vmem:[#allocation5 + $0x208] sm:$0xff]
    %v122 = vld [vmem:[#allocation5 + $0x210] sm:$0xff]
    %v123 = vld [vmem:[#allocation5 + $0x218] sm:$0xff]
    %v124 = vld [vmem:[#allocation5 + $0x220] sm:$0xff]
    %v125 = vld [vmem:[#allocation5 + $0x228] sm:$0xff]
    %v126 = vld [vmem:[#allocation5 + $0x230] sm:$0xff]
    %v127 = vld [vmem:[#allocation5 + $0x238] sm:$0xff]
    %v128 = vld [vmem:[#allocation5 + $0x240] sm:$0xff]
    %v129 = vld [vmem:[#allocation5 + $0x248] sm:$0xff]
    %v130 = vld [vmem:[#allocation5 + $0x250] sm:$0xff]
    %v131 = vld [vmem:[#allocation5 + $0x258] sm:$0xff]
    %v132 = vld [vmem:[#allocation5 + $0x260] sm:$0xff]
    %v133 = vld [vmem:[#allocation5 + $0x268] sm:$0xff]
    %v134 = vld [vmem:[#allocation5 + $0x270] sm:$0xff]
    %v135 = vld [vmem:[#allocation5 + $0x278] sm:$0xff]
    %v136 = vld [vmem:[#allocation5 + $0x280] sm:$0xff]
    %v137 = vld [vmem:[#allocation5 + $0x288] sm:$0xff]
    %v138 = vld [vmem:[#allocation5 + $0x290] sm:$0xff]
    %v139 = vld [vmem:[#allocation5 + $0x298] sm:$0xff]
    %v140 = vld [vmem:[#allocation5 + $0x2a0] sm:$0xff]
    %v141 = vld [vmem:[#allocation5 + $0x2a8] sm:$0xff]
    %v142 = vld [vmem:[#allocation5 + $0x2b0] sm:$0xff]
    %v143 = vld [vmem:[#allocation5 + $0x2b8] sm:$0xff]
    %v144 = vld [vmem:[#allocation5 + $0x2c0] sm:$0xff]
    %v145 = vld [vmem:[#allocation5 + $0x2c8] sm:$0xff]
    %v146 = vld [vmem:[#allocation5 + $0x2d0] sm:$0xff]
    %v147 = vld [vmem:[#allocation5 + $0x2d8] sm:$0xff]
    %v148 = vld [vmem:[#allocation5 + $0x2e0] sm:$0xff]
    %v149 = vld [vmem:[#allocation5 + $0x2e8] sm:$0xff]
    %v150 = vld [vmem:[#allocation5 + $0x2f0] sm:$0xff]
    %v151 = vld [vmem:[#allocation5 + $0x2f8] sm:$0xff]
    %v152 = vld [vmem:[#allocation5 + $0x300] sm:$0xff]
    %v153 = vld [vmem:[#allocation5 + $0x308] sm:$0xff]
    %v154 = vld [vmem:[#allocation5 + $0x310] sm:$0xff]
    %v155 = vld [vmem:[#allocation5 + $0x318] sm:$0xff]
    %v156 = vld [vmem:[#allocation5 + $0x320] sm:$0xff]
    %v157 = vld [vmem:[#allocation5 + $0x328] sm:$0xff]
    %v158 = vld [vmem:[#allocation5 + $0x330] sm:$0xff]
    %v159 = vld [vmem:[#allocation5 + $0x338] sm:$0xff]
    %v160 = vld [vmem:[#allocation5 + $0x340] sm:$0xff]
    %v161 = vld [vmem:[#allocation5 + $0x348] sm:$0xff]
    %v162 = vld [vmem:[#allocation5 + $0x350] sm:$0xff]
    %v163 = vld [vmem:[#allocation5 + $0x358] sm:$0xff]
    %v164 = vld [vmem:[#allocation5 + $0x360] sm:$0xff]
    %v165 = vld [vmem:[#allocation5 + $0x368] sm:$0xff]
    %v166 = vld [vmem:[#allocation5 + $0x370] sm:$0xff]
    %v167 = vld [vmem:[#allocation5 + $0x378] sm:$0xff]
    %v168 = vld [vmem:[#allocation5 + $0x380] sm:$0xff]
    %v169 = vld [vmem:[#allocation5 + $0x388] sm:$0xff]
    %v170 = vld [vmem:[#allocation5 + $0x390] sm:$0xff]
    %v171 = vld [vmem:[#allocation5 + $0x398] sm:$0xff]
    %v172 = vld [vmem:[#allocation5 + $0x3a0] sm:$0xff]
    %v173 = vld [vmem:[#allocation5 + $0x3a8] sm:$0xff]
    %v174 = vld [vmem:[#allocation5 + $0x3b0] sm:$0xff]
    %v175 = vld [vmem:[#allocation5 + $0x3b8] sm:$0xff]
    %v176 = vld [vmem:[#allocation5 + $0x3c0] sm:$0xff]
    %v177 = vld [vmem:[#allocation5 + $0x3c8] sm:$0xff]
    %v178 = vld [vmem:[#allocation5 + $0x3d0] sm:$0xff]
    %v179 = vld [vmem:[#allocation5 + $0x3d8] sm:$0xff]
    %v180 = vld [vmem:[#allocation5 + $0x3e0] sm:$0xff]
    %v181 = vld [vmem:[#allocation5 + $0x3e8] sm:$0xff]
    %v182 = vld [vmem:[#allocation5 + $0x3f0] sm:$0xff]
    %v183 = vld [vmem:[#allocation5 + $0x3f8] sm:$0xff]
    %v184 = vld [vmem:[#allocation5 + $0x400] sm:$0xff]
    %v185 = vld [vmem:[#allocation5 + $0x408] sm:$0xff]
    %v186 = vld [vmem:[#allocation5 + $0x410] sm:$0xff]
    %v187 = vld [vmem:[#allocation5 + $0x418] sm:$0xff]
    %v188 = vld [vmem:[#allocation5 + $0x420] sm:$0xff]
    %v189 = vld [vmem:[#allocation5 + $0x428] sm:$0xff]
    %v190 = vld [vmem:[#allocation5 + $0x430] sm:$0xff]
    %v191 = vld [vmem:[#allocation5 + $0x438] sm:$0xff]
    %v192 = vld [vmem:[#allocation5 + $0x440] sm:$0xff]
    %v193 = vld [vmem:[#allocation5 + $0x448] sm:$0xff]
    %v194 = vld [vmem:[#allocation5 + $0x450] sm:$0xff]
    %v195 = vld [vmem:[#allocation5 + $0x458] sm:$0xff]
    %v196 = vld [vmem:[#allocation5 + $0x460] sm:$0xff]
    %v197 = vld [vmem:[#allocation5 + $0x468] sm:$0xff]
    %v198 = vld [vmem:[#allocation5 + $0x470] sm:$0xff]
    %v199 = vld [vmem:[#allocation5 + $0x478] sm:$0xff]
    %v200 = vld [vmem:[#allocation5 + $0x480] sm:$0xff]
    %v201 = vld [vmem:[#allocation5 + $0x488] sm:$0xff]
    %v202 = vld [vmem:[#allocation5 + $0x490] sm:$0xff]
    %v203 = vld [vmem:[#allocation5 + $0x498] sm:$0xff]
    %v204 = vld [vmem:[#allocation5 + $0x4a0] sm:$0xff]
    %v205 = vld [vmem:[#allocation5 + $0x4a8] sm:$0xff]
    %v206 = vld [vmem:[#allocation5 + $0x4b0] sm:$0xff]
    %v207 = vld [vmem:[#allocation5 + $0x4b8] sm:$0xff]
    %v208 = vld [vmem:[#allocation5 + $0x4c0] sm:$0xff]
    %v209 = vld [vmem:[#allocation5 + $0x4c8] sm:$0xff]
    %v210 = vld [vmem:[#allocation5 + $0x4d0] sm:$0xff]
    %v211 = vld [vmem:[#allocation5 + $0x4d8] sm:$0xff]
    %v212 = vld [vmem:[#allocation5 + $0x4e0] sm:$0xff]
    %v213 = vld [vmem:[#allocation5 + $0x4e8] sm:$0xff]
    %v214 = vld [vmem:[#allocation5 + $0x4f0] sm:$0xff]
    %v215 = vld [vmem:[#allocation5 + $0x4f8] sm:$0xff]
    %v216 = vld [vmem:[#allocation5 + $0x500] sm:$0xff]
    %v217 = vld [vmem:[#allocation5 + $0x508] sm:$0xff]
    %v218 = vld [vmem:[#allocation5 + $0x510] sm:$0xff]
    %v219 = vld [vmem:[#allocation5 + $0x518] sm:$0xff]
    %v220 = vld [vmem:[#allocation5 + $0x520] sm:$0xff]
    %v221 = vld [vmem:[#allocation5 + $0x528] sm:$0xff]
    %v222 = vld [vmem:[#allocation5 + $0x530] sm:$0xff]
    %v223 = vld [vmem:[#allocation5 + $0x538] sm:$0xff]
    %v224 = vld [vmem:[#allocation5 + $0x540] sm:$0xff]
    %v225 = vld [vmem:[#allocation5 + $0x548] sm:$0xff]
    %v226 = vld [vmem:[#allocation5 + $0x550] sm:$0xff]
    %v227 = vld [vmem:[#allocation5 + $0x558] sm:$0xff]
    %v228 = vld [vmem:[#allocation5 + $0x560] sm:$0xff]
    %v229 = vld [vmem:[#allocation5 + $0x568] sm:$0xff]
    %v230 = vld [vmem:[#allocation5 + $0x570] sm:$0xff]
    %v231 = vld [vmem:[#allocation5 + $0x578] sm:$0xff]
    %v232 = vld [vmem:[#allocation5 + $0x580] sm:$0xff]
    %v233 = vld [vmem:[#allocation5 + $0x588] sm:$0xff]
    %v234 = vld [vmem:[#allocation5 + $0x590] sm:$0xff]
    %v235 = vld [vmem:[#allocation5 + $0x598] sm:$0xff]
    %v236 = vld [vmem:[#allocation5 + $0x5a0] sm:$0xff]
    %v237 = vld [vmem:[#allocation5 + $0x5a8] sm:$0xff]
    %v238 = vld [vmem:[#allocation5 + $0x5b0] sm:$0xff]
    %v239 = vld [vmem:[#allocation5 + $0x5b8] sm:$0xff]
    %v240 = vld [vmem:[#allocation5 + $0x5c0] sm:$0xff]
    %v241 = vld [vmem:[#allocation5 + $0x5c8] sm:$0xff]
    %v242 = vld [vmem:[#allocation5 + $0x5d0] sm:$0xff]
    %v243 = vld [vmem:[#allocation5 + $0x5d8] sm:$0xff]
    %v244 = vld [vmem:[#allocation5 + $0x5e0] sm:$0xff]
    %v245 = vld [vmem:[#allocation5 + $0x5e8] sm:$0xff]
    %v246 = vld [vmem:[#allocation5 + $0x5f0] sm:$0xff]
    %v247 = vld [vmem:[#allocation5 + $0x5f8] sm:$0xff]
    %v248 = vld [vmem:[#allocation5 + $0x600] sm:$0xff]
    %v249 = vld [vmem:[#allocation5 + $0x608] sm:$0xff]
    %v250 = vld [vmem:[#allocation5 + $0x610] sm:$0xff]
    %v251 = vld [vmem:[#allocation5 + $0x618] sm:$0xff]
    %v252 = vld [vmem:[#allocation5 + $0x620] sm:$0xff]
    %v253 = vld [vmem:[#allocation5 + $0x628] sm:$0xff]
    %v254 = vld [vmem:[#allocation5 + $0x630] sm:$0xff]
    %v255 = vld [vmem:[#allocation5 + $0x638] sm:$0xff]
    %v256 = vld [vmem:[#allocation5 + $0x640] sm:$0xff]
    %v257 = vld [vmem:[#allocation5 + $0x648] sm:$0xff]
    %v258 = vld [vmem:[#allocation5 + $0x650] sm:$0xff]
    %v259 = vld [vmem:[#allocation5 + $0x658] sm:$0xff]
    %v260 = vld [vmem:[#allocation5 + $0x660] sm:$0xff]
    %v261 = vld [vmem:[#allocation5 + $0x668] sm:$0xff]
    %v262 = vld [vmem:[#allocation5 + $0x670] sm:$0xff]
    %v263 = vld [vmem:[#allocation5 + $0x678] sm:$0xff]
    %v264 = vld [vmem:[#allocation5 + $0x680] sm:$0xff]
    %v265 = vld [vmem:[#allocation5 + $0x688] sm:$0xff]
    %v266 = vld [vmem:[#allocation5 + $0x690] sm:$0xff]
    %v267 = vld [vmem:[#allocation5 + $0x698] sm:$0xff]
    %v268 = vld [vmem:[#allocation5 + $0x6a0] sm:$0xff]
    %v269 = vld [vmem:[#allocation5 + $0x6a8] sm:$0xff]
    %v270 = vld [vmem:[#allocation5 + $0x6b0] sm:$0xff]
    %v271 = vld [vmem:[#allocation5 + $0x6b8] sm:$0xff]
    %v272 = vld [vmem:[#allocation5 + $0x6c0] sm:$0xff]
    %v273 = vld [vmem:[#allocation5 + $0x6c8] sm:$0xff]
    %v274 = vld [vmem:[#allocation5 + $0x6d0] sm:$0xff]
    %v275 = vld [vmem:[#allocation5 + $0x6d8] sm:$0xff]
    %v276 = vld [vmem:[#allocation5 + $0x6e0] sm:$0xff]
    %v277 = vld [vmem:[#allocation5 + $0x6e8] sm:$0xff]
    %v278 = vld [vmem:[#allocation5 + $0x6f0] sm:$0xff]
    %v279 = vld [vmem:[#allocation5 + $0x6f8] sm:$0xff]
    %v280 = vld [vmem:[#allocation5 + $0x700] sm:$0xff]
    %v281 = vld [vmem:[#allocation5 + $0x708] sm:$0xff]
    %v282 = vld [vmem:[#allocation5 + $0x710] sm:$0xff]
    %v283 = vld [vmem:[#allocation5 + $0x718] sm:$0xff]
    %v284 = vld [vmem:[#allocation5 + $0x720] sm:$0xff]
    %v285 = vld [vmem:[#allocation5 + $0x728] sm:$0xff]
    %v286 = vld [vmem:[#allocation5 + $0x730] sm:$0xff]
    %v287 = vld [vmem:[#allocation5 + $0x738] sm:$0xff]
    %v288 = vld [vmem:[#allocation5 + $0x740] sm:$0xff]
    %v289 = vld [vmem:[#allocation5 + $0x748] sm:$0xff]
    %v290 = vld [vmem:[#allocation5 + $0x750] sm:$0xff]
    %v291 = vld [vmem:[#allocation5 + $0x758] sm:$0xff]
    %v292 = vld [vmem:[#allocation5 + $0x760] sm:$0xff]
    %v293 = vld [vmem:[#allocation5 + $0x768] sm:$0xff]
    %v294 = vld [vmem:[#allocation5 + $0x770] sm:$0xff]
    %v295 = vld [vmem:[#allocation5 + $0x778] sm:$0xff]
    %v296 = vld [vmem:[%s2] sm:$0x1]
    %v298 = vlaneseq
    %v299 = vshrl.u32 %v298, 7
    %v300 = vsub.s32 0, %v299
    %v301 = vrot.slane %v296, %v300
    %303 = vmatprep.subr.mxu0 0.0
    %304 = vmatpush1.msra.mxu0 %v71
    %305 = vmatprep.subr.mxu0 0.0
    %306 = vmatpush1.msra.mxu0 %v70
    %307 = vmatprep.subr.mxu0 0.0
    %308 = vmatpush1.msra.mxu0 %v69
    %309 = vmatprep.subr.mxu0 0.0
    %310 = vmatpush1.msra.mxu0 %v68
    %311 = vmatprep.subr.mxu0 0.0
    %312 = vmatpush1.msra.mxu0 %v67
    %313 = vmatprep.subr.mxu0 0.0
    %314 = vmatpush1.msra.mxu0 %v66
    %315 = vmatprep.subr.mxu0 0.0
    %316 = vmatpush1.msra.mxu0 %v65
    %317 = vmatprep.subr.mxu0 0.0
    %318 = vmatpush1.msra.mxu0 %v64
    %319 = vmatprep.subr.mxu0 0.0
    %320 = vmatpush1.msra.mxu0 %v63
    %321 = vmatprep.subr.mxu0 0.0
    %322 = vmatpush1.msra.mxu0 %v62
    %323 = vmatprep.subr.mxu0 0.0
    %324 = vmatpush1.msra.mxu0 %v61
    %325 = vmatprep.subr.mxu0 0.0
    %326 = vmatpush1.msra.mxu0 %v60
    %327 = vmatprep.subr.mxu0 0.0
    %328 = vmatpush1.msra.mxu0 %v59
    %329 = vmatprep.subr.mxu0 0.0
    %330 = vmatpush1.msra.mxu0 %v58
    %331 = vmatprep.subr.mxu0 0.0
    %332 = vmatpush1.msra.mxu0 %v57
    %333 = vmatprep.subr.mxu0 0.0
    %334 = vmatpush1.msra.mxu0 %v56
    %335 = vmatprep.subr.mxu0 0.0
    %336 = vmatpush2.msra.mxu0 %v87
    %337 = vmatprep.subr.mxu0 0.0
    %338 = vmatpush2.msra.mxu0 %v86
    %339 = vmatprep.subr.mxu0 0.0
    %340 = vmatpush2.msra.mxu0 %v85
    %341 = vmatprep.subr.mxu0 0.0
    %342 = vmatpush2.msra.mxu0 %v84
    %343 = vmatprep.subr.mxu0 0.0
    %344 = vmatpush2.msra.mxu0 %v83
    %345 = vmatprep.subr.mxu0 0.0
    %346 = vmatpush2.msra.mxu0 %v82
    %347 = vmatprep.subr.mxu0 0.0
    %348 = vmatpush2.msra.mxu0 %v81
    %349 = vmatprep.subr.mxu0 0.0
    %350 = vmatpush2.msra.mxu0 %v80
    %351 = vmatprep.subr.mxu0 0.0
    %352 = vmatpush2.msra.mxu0 %v79
    %353 = vmatprep.subr.mxu0 0.0
    %354 = vmatpush2.msra.mxu0 %v78
    %355 = vmatprep.subr.mxu0 0.0
    %356 = vmatpush2.msra.mxu0 %v77
    %357 = vmatprep.subr.mxu0 0.0
    %358 = vmatpush2.msra.mxu0 %v76
    %359 = vmatprep.subr.mxu0 0.0
    %360 = vmatpush2.msra.mxu0 %v75
    %361 = vmatprep.subr.mxu0 0.0
    %362 = vmatpush2.msra.mxu0 %v74
    %363 = vmatprep.subr.mxu0 0.0
    %364 = vmatpush2.msra.mxu0 %v73
    %365 = vmatprep.subr.mxu0 0.0
    %366 = vmatpush2.msra.mxu0 %v72
    %367 = vmatprep.mubr.f32.mxu0 %v42
    %368 = vmatmul.mubr.f32.gmra.mxu0 %v41
    %v369 = vpop.f32.mrf.mxu0
    %v370 = vadd.f32 %v301, %v369
    %v371 = vpop.f32.mrf.mxu0
    %372 = vdwg.mxu0
    %373 = vmatprep.subr.mxu0 0.0
    %374 = vmatpush1.msra.mxu0 %v103
    %375 = vmatprep.subr.mxu0 0.0
    %376 = vmatpush1.msra.mxu0 %v102
    %377 = vmatprep.subr.mxu0 0.0
    %378 = vmatpush1.msra.mxu0 %v101
    %379 = vmatprep.subr.mxu0 0.0
    %380 = vmatpush1.msra.mxu0 %v100
    %381 = vmatprep.subr.mxu0 0.0
    %382 = vmatpush1.msra.mxu0 %v99
    %383 = vmatprep.subr.mxu0 0.0
    %384 = vmatpush1.msra.mxu0 %v98
    %385 = vmatprep.subr.mxu0 0.0
    %386 = vmatpush1.msra.mxu0 %v97
    %387 = vmatprep.subr.mxu0 0.0
    %388 = vmatpush1.msra.mxu0 %v96
    %389 = vmatprep.subr.mxu0 0.0
    %390 = vmatpush1.msra.mxu0 %v95
    %391 = vmatprep.subr.mxu0 0.0
    %392 = vmatpush1.msra.mxu0 %v94
    %393 = vmatprep.subr.mxu0 0.0
    %394 = vmatpush1.msra.mxu0 %v93
    %395 = vmatprep.subr.mxu0 0.0
    %396 = vmatpush1.msra.mxu0 %v92
    %397 = vmatprep.subr.mxu0 0.0
    %398 = vmatpush1.msra.mxu0 %v91
    %399 = vmatprep.subr.mxu0 0.0
    %400 = vmatpush1.msra.mxu0 %v90
    %401 = vmatprep.subr.mxu0 0.0
    %402 = vmatpush1.msra.mxu0 %v89
    %403 = vmatprep.subr.mxu0 0.0
    %404 = vmatpush1.msra.mxu0 %v88
    %405 = vmatprep.subr.mxu0 0.0
    %406 = vmatpush2.msra.mxu0 %v119
    %407 = vmatprep.subr.mxu0 0.0
    %408 = vmatpush2.msra.mxu0 %v118
    %409 = vmatprep.subr.mxu0 0.0
    %410 = vmatpush2.msra.mxu0 %v117
    %411 = vmatprep.subr.mxu0 0.0
    %412 = vmatpush2.msra.mxu0 %v116
    %413 = vmatprep.subr.mxu0 0.0
    %414 = vmatpush2.msra.mxu0 %v115
    %415 = vmatprep.subr.mxu0 0.0
    %416 = vmatpush2.msra.mxu0 %v114
    %417 = vmatprep.subr.mxu0 0.0
    %418 = vmatpush2.msra.mxu0 %v113
    %419 = vmatprep.subr.mxu0 0.0
    %420 = vmatpush2.msra.mxu0 %v112
    %421 = vmatprep.subr.mxu0 0.0
    %422 = vmatpush2.msra.mxu0 %v111
    %423 = vmatprep.subr.mxu0 0.0
    %424 = vmatpush2.msra.mxu0 %v110
    %425 = vmatprep.subr.mxu0 0.0
    %426 = vmatpush2.msra.mxu0 %v109
    %427 = vmatprep.subr.mxu0 0.0
    %428 = vmatpush2.msra.mxu0 %v108
    %429 = vmatprep.subr.mxu0 0.0
    %430 = vmatpush2.msra.mxu0 %v107
    %431 = vmatprep.subr.mxu0 0.0
    %432 = vmatpush2.msra.mxu0 %v106
    %433 = vmatprep.subr.mxu0 0.0
    %434 = vmatpush2.msra.mxu0 %v105
    %435 = vmatprep.subr.mxu0 0.0
    %436 = vmatpush2.msra.mxu0 %v104
    %437 = vmatprep.mubr.f32.mxu0 %v44
    %438 = vmatmul.mubr.f32.gmra.mxu0 %v43
    %v439 = vpop.f32.mrf.mxu0
    %v440 = vadd.f32 %v370, %v439
    %v441 = vpop.f32.mrf.mxu0
    %442 = vdwg.mxu0
    %443 = vmatprep.subr.mxu0 0.0
    %444 = vmatpush1.msra.mxu0 %v135
    %445 = vmatprep.subr.mxu0 0.0
    %446 = vmatpush1.msra.mxu0 %v134
    %447 = vmatprep.subr.mxu0 0.0
    %448 = vmatpush1.msra.mxu0 %v133
    %449 = vmatprep.subr.mxu0 0.0
    %450 = vmatpush1.msra.mxu0 %v132
    %451 = vmatprep.subr.mxu0 0.0
    %452 = vmatpush1.msra.mxu0 %v131
    %453 = vmatprep.subr.mxu0 0.0
    %454 = vmatpush1.msra.mxu0 %v130
    %455 = vmatprep.subr.mxu0 0.0
    %456 = vmatpush1.msra.mxu0 %v129
    %457 = vmatprep.subr.mxu0 0.0
    %458 = vmatpush1.msra.mxu0 %v128
    %459 = vmatprep.subr.mxu0 0.0
    %460 = vmatpush1.msra.mxu0 %v127
    %461 = vmatprep.subr.mxu0 0.0
    %462 = vmatpush1.msra.mxu0 %v126
    %463 = vmatprep.subr.mxu0 0.0
    %464 = vmatpush1.msra.mxu0 %v125
    %465 = vmatprep.subr.mxu0 0.0
    %466 = vmatpush1.msra.mxu0 %v124
    %467 = vmatprep.subr.mxu0 0.0
    %468 = vmatpush1.msra.mxu0 %v123
    %469 = vmatprep.subr.mxu0 0.0
    %470 = vmatpush1.msra.mxu0 %v122
    %471 = vmatprep.subr.mxu0 0.0
    %472 = vmatpush1.msra.mxu0 %v121
    %473 = vmatprep.subr.mxu0 0.0
    %474 = vmatpush1.msra.mxu0 %v120
    %475 = vmatprep.subr.mxu0 0.0
    %476 = vmatpush2.msra.mxu0 %v151
    %477 = vmatprep.subr.mxu0 0.0
    %478 = vmatpush2.msra.mxu0 %v150
    %479 = vmatprep.subr.mxu0 0.0
    %480 = vmatpush2.msra.mxu0 %v149
    %481 = vmatprep.subr.mxu0 0.0
    %482 = vmatpush2.msra.mxu0 %v148
    %483 = vmatprep.subr.mxu0 0.0
    %484 = vmatpush2.msra.mxu0 %v147
    %485 = vmatprep.subr.mxu0 0.0
    %486 = vmatpush2.msra.mxu0 %v146
    %487 = vmatprep.subr.mxu0 0.0
    %488 = vmatpush2.msra.mxu0 %v145
    %489 = vmatprep.subr.mxu0 0.0
    %490 = vmatpush2.msra.mxu0 %v144
    %491 = vmatprep.subr.mxu0 0.0
    %492 = vmatpush2.msra.mxu0 %v143
    %493 = vmatprep.subr.mxu0 0.0
    %494 = vmatpush2.msra.mxu0 %v142
    %495 = vmatprep.subr.mxu0 0.0
    %496 = vmatpush2.msra.mxu0 %v141
    %497 = vmatprep.subr.mxu0 0.0
    %498 = vmatpush2.msra.mxu0 %v140
    %499 = vmatprep.subr.mxu0 0.0
    %500 = vmatpush2.msra.mxu0 %v139
    %501 = vmatprep.subr.mxu0 0.0
    %502 = vmatpush2.msra.mxu0 %v138
    %503 = vmatprep.subr.mxu0 0.0
    %504 = vmatpush2.msra.mxu0 %v137
    %505 = vmatprep.subr.mxu0 0.0
    %506 = vmatpush2.msra.mxu0 %v136
    %507 = vmatprep.mubr.f32.mxu0 %v46
    %508 = vmatmul.mubr.f32.gmra.mxu0 %v45
    %v509 = vpop.f32.mrf.mxu0
    %v510 = vadd.f32 %v440, %v509
    %v511 = vpop.f32.mrf.mxu0
    %512 = vdwg.mxu0
    %513 = vmatprep.subr.mxu0 0.0
    %514 = vmatpush1.msra.mxu0 %v167
    %515 = vmatprep.subr.mxu0 0.0
    %516 = vmatpush1.msra.mxu0 %v166
    %517 = vmatprep.subr.mxu0 0.0
    %518 = vmatpush1.msra.mxu0 %v165
    %519 = vmatprep.subr.mxu0 0.0
    %520 = vmatpush1.msra.mxu0 %v164
    %521 = vmatprep.subr.mxu0 0.0
    %522 = vmatpush1.msra.mxu0 %v163
    %523 = vmatprep.subr.mxu0 0.0
    %524 = vmatpush1.msra.mxu0 %v162
    %525 = vmatprep.subr.mxu0 0.0
    %526 = vmatpush1.msra.mxu0 %v161
    %527 = vmatprep.subr.mxu0 0.0
    %528 = vmatpush1.msra.mxu0 %v160
    %529 = vmatprep.subr.mxu0 0.0
    %530 = vmatpush1.msra.mxu0 %v159
    %531 = vmatprep.subr.mxu0 0.0
    %532 = vmatpush1.msra.mxu0 %v158
    %533 = vmatprep.subr.mxu0 0.0
    %534 = vmatpush1.msra.mxu0 %v157
    %535 = vmatprep.subr.mxu0 0.0
    %536 = vmatpush1.msra.mxu0 %v156
    %537 = vmatprep.subr.mxu0 0.0
    %538 = vmatpush1.msra.mxu0 %v155
    %539 = vmatprep.subr.mxu0 0.0
    %540 = vmatpush1.msra.mxu0 %v154
    %541 = vmatprep.subr.mxu0 0.0
    %542 = vmatpush1.msra.mxu0 %v153
    %543 = vmatprep.subr.mxu0 0.0
    %544 = vmatpush1.msra.mxu0 %v152
    %545 = vmatprep.subr.mxu0 0.0
    %546 = vmatpush2.msra.mxu0 %v183
    %547 = vmatprep.subr.mxu0 0.0
    %548 = vmatpush2.msra.mxu0 %v182
    %549 = vmatprep.subr.mxu0 0.0
    %550 = vmatpush2.msra.mxu0 %v181
    %551 = vmatprep.subr.mxu0 0.0
    %552 = vmatpush2.msra.mxu0 %v180
    %553 = vmatprep.subr.mxu0 0.0
    %554 = vmatpush2.msra.mxu0 %v179
    %555 = vmatprep.subr.mxu0 0.0
    %556 = vmatpush2.msra.mxu0 %v178
    %557 = vmatprep.subr.mxu0 0.0
    %558 = vmatpush2.msra.mxu0 %v177
    %559 = vmatprep.subr.mxu0 0.0
    %560 = vmatpush2.msra.mxu0 %v176
    %561 = vmatprep.subr.mxu0 0.0
    %562 = vmatpush2.msra.mxu0 %v175
    %563 = vmatprep.subr.mxu0 0.0
    %564 = vmatpush2.msra.mxu0 %v174
    %565 = vmatprep.subr.mxu0 0.0
    %566 = vmatpush2.msra.mxu0 %v173
    %567 = vmatprep.subr.mxu0 0.0
    %568 = vmatpush2.msra.mxu0 %v172
    %569 = vmatprep.subr.mxu0 0.0
    %570 = vmatpush2.msra.mxu0 %v171
    %571 = vmatprep.subr.mxu0 0.0
    %572 = vmatpush2.msra.mxu0 %v170
    %573 = vmatprep.subr.mxu0 0.0
    %574 = vmatpush2.msra.mxu0 %v169
    %575 = vmatprep.subr.mxu0 0.0
    %576 = vmatpush2.msra.mxu0 %v168
    %577 = vmatprep.mubr.f32.mxu0 %v48
    %578 = vmatmul.mubr.f32.gmra.mxu0 %v47
    %v579 = vpop.f32.mrf.mxu0
    %v580 = vadd.f32 %v510, %v579
    %v581 = vpop.f32.mrf.mxu0
    %582 = vdwg.mxu0
    %583 = vmatprep.subr.mxu0 0.0
    %584 = vmatpush1.msra.mxu0 %v199
    %585 = vmatprep.subr.mxu0 0.0
    %586 = vmatpush1.msra.mxu0 %v198
    %587 = vmatprep.subr.mxu0 0.0
    %588 = vmatpush1.msra.mxu0 %v197
    %589 = vmatprep.subr.mxu0 0.0
    %590 = vmatpush1.msra.mxu0 %v196
    %591 = vmatprep.subr.mxu0 0.0
    %592 = vmatpush1.msra.mxu0 %v195
    %593 = vmatprep.subr.mxu0 0.0
    %594 = vmatpush1.msra.mxu0 %v194
    %595 = vmatprep.subr.mxu0 0.0
    %596 = vmatpush1.msra.mxu0 %v193
    %597 = vmatprep.subr.mxu0 0.0
    %598 = vmatpush1.msra.mxu0 %v192
    %599 = vmatprep.subr.mxu0 0.0
    %600 = vmatpush1.msra.mxu0 %v191
    %601 = vmatprep.subr.mxu0 0.0
    %602 = vmatpush1.msra.mxu0 %v190
    %603 = vmatprep.subr.mxu0 0.0
    %604 = vmatpush1.msra.mxu0 %v189
    %605 = vmatprep.subr.mxu0 0.0
    %606 = vmatpush1.msra.mxu0 %v188
    %607 = vmatprep.subr.mxu0 0.0
    %608 = vmatpush1.msra.mxu0 %v187
    %609 = vmatprep.subr.mxu0 0.0
    %610 = vmatpush1.msra.mxu0 %v186
    %611 = vmatprep.subr.mxu0 0.0
    %612 = vmatpush1.msra.mxu0 %v185
    %613 = vmatprep.subr.mxu0 0.0
    %614 = vmatpush1.msra.mxu0 %v184
    %615 = vmatprep.subr.mxu0 0.0
    %616 = vmatpush2.msra.mxu0 %v215
    %617 = vmatprep.subr.mxu0 0.0
    %618 = vmatpush2.msra.mxu0 %v214
    %619 = vmatprep.subr.mxu0 0.0
    %620 = vmatpush2.msra.mxu0 %v213
    %621 = vmatprep.subr.mxu0 0.0
    %622 = vmatpush2.msra.mxu0 %v212
    %623 = vmatprep.subr.mxu0 0.0
    %624 = vmatpush2.msra.mxu0 %v211
    %625 = vmatprep.subr.mxu0 0.0
    %626 = vmatpush2.msra.mxu0 %v210
    %627 = vmatprep.subr.mxu0 0.0
    %628 = vmatpush2.msra.mxu0 %v209
    %629 = vmatprep.subr.mxu0 0.0
    %630 = vmatpush2.msra.mxu0 %v208
    %631 = vmatprep.subr.mxu0 0.0
    %632 = vmatpush2.msra.mxu0 %v207
    %633 = vmatprep.subr.mxu0 0.0
    %634 = vmatpush2.msra.mxu0 %v206
    %635 = vmatprep.subr.mxu0 0.0
    %636 = vmatpush2.msra.mxu0 %v205
    %637 = vmatprep.subr.mxu0 0.0
    %638 = vmatpush2.msra.mxu0 %v204
    %639 = vmatprep.subr.mxu0 0.0
    %640 = vmatpush2.msra.mxu0 %v203
    %641 = vmatprep.subr.mxu0 0.0
    %642 = vmatpush2.msra.mxu0 %v202
    %643 = vmatprep.subr.mxu0 0.0
    %644 = vmatpush2.msra.mxu0 %v201
    %645 = vmatprep.subr.mxu0 0.0
    %646 = vmatpush2.msra.mxu0 %v200
    %647 = vmatprep.mubr.f32.mxu0 %v50
    %648 = vmatmul.mubr.f32.gmra.mxu0 %v49
    %v649 = vpop.f32.mrf.mxu0
    %v650 = vadd.f32 %v580, %v649
    %v651 = vpop.f32.mrf.mxu0
    %652 = vdwg.mxu0
    %653 = vmatprep.subr.mxu0 0.0
    %654 = vmatpush1.msra.mxu0 %v231
    %655 = vmatprep.subr.mxu0 0.0
    %656 = vmatpush1.msra.mxu0 %v230
    %657 = vmatprep.subr.mxu0 0.0
    %658 = vmatpush1.msra.mxu0 %v229
    %659 = vmatprep.subr.mxu0 0.0
    %660 = vmatpush1.msra.mxu0 %v228
    %661 = vmatprep.subr.mxu0 0.0
    %662 = vmatpush1.msra.mxu0 %v227
    %663 = vmatprep.subr.mxu0 0.0
    %664 = vmatpush1.msra.mxu0 %v226
    %665 = vmatprep.subr.mxu0 0.0
    %666 = vmatpush1.msra.mxu0 %v225
    %667 = vmatprep.subr.mxu0 0.0
    %668 = vmatpush1.msra.mxu0 %v224
    %669 = vmatprep.subr.mxu0 0.0
    %670 = vmatpush1.msra.mxu0 %v223
    %671 = vmatprep.subr.mxu0 0.0
    %672 = vmatpush1.msra.mxu0 %v222
    %673 = vmatprep.subr.mxu0 0.0
    %674 = vmatpush1.msra.mxu0 %v221
    %675 = vmatprep.subr.mxu0 0.0
    %676 = vmatpush1.msra.mxu0 %v220
    %677 = vmatprep.subr.mxu0 0.0
    %678 = vmatpush1.msra.mxu0 %v219
    %679 = vmatprep.subr.mxu0 0.0
    %680 = vmatpush1.msra.mxu0 %v218
    %681 = vmatprep.subr.mxu0 0.0
    %682 = vmatpush1.msra.mxu0 %v217
    %683 = vmatprep.subr.mxu0 0.0
    %684 = vmatpush1.msra.mxu0 %v216
    %685 = vmatprep.subr.mxu0 0.0
    %686 = vmatpush2.msra.mxu0 %v247
    %687 = vmatprep.subr.mxu0 0.0
    %688 = vmatpush2.msra.mxu0 %v246
    %689 = vmatprep.subr.mxu0 0.0
    %690 = vmatpush2.msra.mxu0 %v245
    %691 = vmatprep.subr.mxu0 0.0
    %692 = vmatpush2.msra.mxu0 %v244
    %693 = vmatprep.subr.mxu0 0.0
    %694 = vmatpush2.msra.mxu0 %v243
    %695 = vmatprep.subr.mxu0 0.0
    %696 = vmatpush2.msra.mxu0 %v242
    %697 = vmatprep.subr.mxu0 0.0
    %698 = vmatpush2.msra.mxu0 %v241
    %699 = vmatprep.subr.mxu0 0.0
    %700 = vmatpush2.msra.mxu0 %v240
    %701 = vmatprep.subr.mxu0 0.0
    %702 = vmatpush2.msra.mxu0 %v239
    %703 = vmatprep.subr.mxu0 0.0
    %704 = vmatpush2.msra.mxu0 %v238
    %705 = vmatprep.subr.mxu0 0.0
    %706 = vmatpush2.msra.mxu0 %v237
    %707 = vmatprep.subr.mxu0 0.0
    %708 = vmatpush2.msra.mxu0 %v236
    %709 = vmatprep.subr.mxu0 0.0
    %710 = vmatpush2.msra.mxu0 %v235
    %711 = vmatprep.subr.mxu0 0.0
    %712 = vmatpush2.msra.mxu0 %v234
    %713 = vmatprep.subr.mxu0 0.0
    %714 = vmatpush2.msra.mxu0 %v233
    %715 = vmatprep.subr.mxu0 0.0
    %716 = vmatpush2.msra.mxu0 %v232
    %717 = vmatprep.mubr.f32.mxu0 %v52
    %718 = vmatmul.mubr.f32.gmra.mxu0 %v51
    %v719 = vpop.f32.mrf.mxu0
    %v720 = vadd.f32 %v650, %v719
    %v721 = vpop.f32.mrf.mxu0
    %722 = vdwg.mxu0
    %723 = vmatprep.subr.mxu0 0.0
    %724 = vmatpush1.msra.mxu0 %v263
    %725 = vmatprep.subr.mxu0 0.0
    %726 = vmatpush1.msra.mxu0 %v262
    %727 = vmatprep.subr.mxu0 0.0
    %728 = vmatpush1.msra.mxu0 %v261
    %729 = vmatprep.subr.mxu0 0.0
    %730 = vmatpush1.msra.mxu0 %v260
    %731 = vmatprep.subr.mxu0 0.0
    %732 = vmatpush1.msra.mxu0 %v259
    %733 = vmatprep.subr.mxu0 0.0
    %734 = vmatpush1.msra.mxu0 %v258
    %735 = vmatprep.subr.mxu0 0.0
    %736 = vmatpush1.msra.mxu0 %v257
    %737 = vmatprep.subr.mxu0 0.0
    %738 = vmatpush1.msra.mxu0 %v256
    %739 = vmatprep.subr.mxu0 0.0
    %740 = vmatpush1.msra.mxu0 %v255
    %741 = vmatprep.subr.mxu0 0.0
    %742 = vmatpush1.msra.mxu0 %v254
    %743 = vmatprep.subr.mxu0 0.0
    %744 = vmatpush1.msra.mxu0 %v253
    %745 = vmatprep.subr.mxu0 0.0
    %746 = vmatpush1.msra.mxu0 %v252
    %747 = vmatprep.subr.mxu0 0.0
    %748 = vmatpush1.msra.mxu0 %v251
    %749 = vmatprep.subr.mxu0 0.0
    %750 = vmatpush1.msra.mxu0 %v250
    %751 = vmatprep.subr.mxu0 0.0
    %752 = vmatpush1.msra.mxu0 %v249
    %753 = vmatprep.subr.mxu0 0.0
    %754 = vmatpush1.msra.mxu0 %v248
    %755 = vmatprep.subr.mxu0 0.0
    %756 = vmatpush2.msra.mxu0 %v279
    %757 = vmatprep.subr.mxu0 0.0
    %758 = vmatpush2.msra.mxu0 %v278
    %759 = vmatprep.subr.mxu0 0.0
    %760 = vmatpush2.msra.mxu0 %v277
    %761 = vmatprep.subr.mxu0 0.0
    %762 = vmatpush2.msra.mxu0 %v276
    %763 = vmatprep.subr.mxu0 0.0
    %764 = vmatpush2.msra.mxu0 %v275
    %765 = vmatprep.subr.mxu0 0.0
    %766 = vmatpush2.msra.mxu0 %v274
    %767 = vmatprep.subr.mxu0 0.0
    %768 = vmatpush2.msra.mxu0 %v273
    %769 = vmatprep.subr.mxu0 0.0
    %770 = vmatpush2.msra.mxu0 %v272
    %771 = vmatprep.subr.mxu0 0.0
    %772 = vmatpush2.msra.mxu0 %v271
    %773 = vmatprep.subr.mxu0 0.0
    %774 = vmatpush2.msra.mxu0 %v270
    %775 = vmatprep.subr.mxu0 0.0
    %776 = vmatpush2.msra.mxu0 %v269
    %777 = vmatprep.subr.mxu0 0.0
    %778 = vmatpush2.msra.mxu0 %v268
    %779 = vmatprep.subr.mxu0 0.0
    %780 = vmatpush2.msra.mxu0 %v267
    %781 = vmatprep.subr.mxu0 0.0
    %782 = vmatpush2.msra.mxu0 %v266
    %783 = vmatprep.subr.mxu0 0.0
    %784 = vmatpush2.msra.mxu0 %v265
    %785 = vmatprep.subr.mxu0 0.0
    %786 = vmatpush2.msra.mxu0 %v264
    %787 = vmatprep.mubr.f32.mxu0 %v54
    %788 = vmatmul.mubr.f32.gmra.mxu0 %v53
    %v789 = vpop.f32.mrf.mxu0
    %v790 = vadd.f32 %v720, %v789
    %v791 = vpop.f32.mrf.mxu0
    %792 = vdwg.mxu0
    %793 = vmatprep.subr.mxu0 0.0
    %794 = vmatpush1.msra.mxu0 %v295
    %795 = vmatprep.subr.mxu0 0.0
    %796 = vmatpush1.msra.mxu0 %v294
    %797 = vmatprep.subr.mxu0 0.0
    %798 = vmatpush1.msra.mxu0 %v293
    %799 = vmatprep.subr.mxu0 0.0
    %800 = vmatpush1.msra.mxu0 %v292
    %801 = vmatprep.subr.mxu0 0.0
    %802 = vmatpush1.msra.mxu0 %v291
    %803 = vmatprep.subr.mxu0 0.0
    %804 = vmatpush1.msra.mxu0 %v290
    %805 = vmatprep.subr.mxu0 0.0
    %806 = vmatpush1.msra.mxu0 %v289
    %807 = vmatprep.subr.mxu0 0.0
    %808 = vmatpush1.msra.mxu0 %v288
    %809 = vmatprep.subr.mxu0 0.0
    %810 = vmatpush1.msra.mxu0 %v287
    %811 = vmatprep.subr.mxu0 0.0
    %812 = vmatpush1.msra.mxu0 %v286
    %813 = vmatprep.subr.mxu0 0.0
    %814 = vmatpush1.msra.mxu0 %v285
    %815 = vmatprep.subr.mxu0 0.0
    %816 = vmatpush1.msra.mxu0 %v284
    %817 = vmatprep.subr.mxu0 0.0
    %818 = vmatpush1.msra.mxu0 %v283
    %819 = vmatprep.subr.mxu0 0.0
    %820 = vmatpush1.msra.mxu0 %v282
    %821 = vmatprep.subr.mxu0 0.0
    %822 = vmatpush1.msra.mxu0 %v281
    %823 = vmatprep.subr.mxu0 0.0
    %824 = vmatpush1.msra.mxu0 %v280
    %825 = vmatprep.subr.mxu0 0.0
    %826 = vmatpush2.msra.mxu0 0.0
    %827 = vmatprep.subr.mxu0 0.0
    %828 = vmatpush2.msra.mxu0 0.0
    %829 = vmatprep.subr.mxu0 0.0
    %830 = vmatpush2.msra.mxu0 0.0
    %831 = vmatprep.subr.mxu0 0.0
    %832 = vmatpush2.msra.mxu0 0.0
    %833 = vmatprep.subr.mxu0 0.0
    %834 = vmatpush2.msra.mxu0 0.0
    %835 = vmatprep.subr.mxu0 0.0
    %836 = vmatpush2.msra.mxu0 0.0
    %837 = vmatprep.subr.mxu0 0.0
    %838 = vmatpush2.msra.mxu0 0.0
    %839 = vmatprep.subr.mxu0 0.0
    %840 = vmatpush2.msra.mxu0 0.0
    %841 = vmatprep.subr.mxu0 0.0
    %842 = vmatpush2.msra.mxu0 0.0
    %843 = vmatprep.subr.mxu0 0.0
    %844 = vmatpush2.msra.mxu0 0.0
    %845 = vmatprep.subr.mxu0 0.0
    %846 = vmatpush2.msra.mxu0 0.0
    %847 = vmatprep.subr.mxu0 0.0
    %848 = vmatpush2.msra.mxu0 0.0
    %849 = vmatprep.subr.mxu0 0.0
    %850 = vmatpush2.msra.mxu0 0.0
    %851 = vmatprep.subr.mxu0 0.0
    %852 = vmatpush2.msra.mxu0 0.0
    %853 = vmatprep.subr.mxu0 0.0
    %854 = vmatpush2.msra.mxu0 0.0
    %855 = vmatprep.subr.mxu0 0.0
    %856 = vmatpush2.msra.mxu0 0.0
    %857 = vmatprep.mubr.f32.mxu0 0.0
    %858 = vmatmul.mubr.f32.gmra.mxu0 %v55
    %v859 = vpop.f32.mrf.mxu0
    %v860 = vadd.f32 %v790, %v859
    %v861 = vpop.f32.mrf.mxu0
    %862 = vdwg.mxu0
    %863 = vst [vmem:[#allocation7] sm:$0xff] %v860
    // Predicated region
    $region22: #{tpu_custom_call.1} parent=1 // pred_check
      _
    $region23: #{tpu_custom_call.1} parent=1 // pred_check_branch
      %865 = sbr.rel (0) target = $region25
    $region24: #{tpu_custom_call.1} parent=1 // pred_region
      %s867 = ssub.s32 128, 128
      %868 = vsyncadd [#allocation4], %s867
      %s870 = sshll.u32 [#allocation7], 4
      %s871 = int_to_ptr.vmem [resolvable:$true] %s870
      %873 = dma.vmem_to_hbm [thread:$0]  %s871, 128, %s3, [#allocation4]
    $region25: #{tpu_custom_call.1} parent=1 // pred_fallthru
      _
    // Predicated region
    $region26: #{tpu_custom_call.1} parent=1 // pred_check
      _
    $region27: #{tpu_custom_call.1} parent=1 // pred_check_branch
      %875 = sbr.rel (0) target = $region29
    $region28: #{tpu_custom_call.1} parent=1 // pred_region
      %876 = dma.done [#allocation4], 128
    $region29: #{tpu_custom_call.1} parent=1 // pred_fallthru
      _
    %877 = vsyncpa [#allocation3], 1
    %878 = vsyncpa [#allocation6], 1
    %879 = vsyncpa [#allocation4], 1

</llo_original>
